<compile_context>
chip_gen: v5e
topology: v5e:2x2
jax: 0.10.0
libtpu: 0.0.40
codegen_flags: <defaults>
</compile_context>

<pallas_src>
import jax
import jax.numpy as jnp
from jax.experimental import pallas as pl
from jax.experimental.pallas import tpu as pltpu


def mlp_kernel(x_ref, w1_ref, b1_ref, w2_ref, b2_ref, w3_ref, b3_ref, o_ref):
    # Layer 1: bf16 MXU matmul, f32 accumulate; bias + ReLU in f32.
    h1 = jnp.dot(x_ref[...], w1_ref[...], preferred_element_type=jnp.float32)
    h1 = jnp.maximum(h1 + b1_ref[...], 0.0)

    # Layer 2: cast activation back to bf16 for the MXU, accumulate in f32.
    h2 = jnp.dot(h1.astype(jnp.bfloat16), w2_ref[...],
                 preferred_element_type=jnp.float32)
    h2 = jnp.maximum(h2 + b2_ref[...], 0.0)

    # Layer 3 (out_features == 1): VPU multiply + cross-lane reduce instead of
    # an N=1 MXU matmul.  w3_ref is the weight column passed as a (1, H) row.
    out = jnp.sum(h2 * w3_ref[...], axis=-1, keepdims=True) + b3_ref[...]
    o_ref[...] = out.astype(o_ref.dtype)


def mlp_forward(x, w1, b1, w2, b2, w3, b3, *, tile_m=None):
    B, D_in = x.shape
    H = w1.shape[1]
    D_out = w3.shape[1]
    assert D_out == 1, "kernel specializes the final layer to output_size == 1"

    # Tile the batch: one step if it all fits a reasonable tile, else 128-row
    # tiles (full MXU rows; keeps the batch axis shardable across TCs on v7x).
    if tile_m is None:
        tile_m = 128 if (B % 128 == 0 and B > 128) else B
    assert B % tile_m == 0
    grid = (B // tile_m,)

    # bf16 operands for the MXU; biases and the final weight row stay f32.
    x_bf = x.astype(jnp.bfloat16)
    w1_bf = w1.astype(jnp.bfloat16)
    w2_bf = w2.astype(jnp.bfloat16)
    b1r = b1.reshape(1, H).astype(jnp.float32)
    b2r = b2.reshape(1, H).astype(jnp.float32)
    w3r = w3.reshape(1, H).astype(jnp.float32)   # (H, 1) column -> (1, H) row
    b3r = b3.reshape(1, 1).astype(jnp.float32)

    return pl.pallas_call(
        mlp_kernel,
        out_shape=jax.ShapeDtypeStruct((B, D_out), jnp.float32),
        grid_spec=pltpu.PrefetchScalarGridSpec(
            num_scalar_prefetch=0,
            grid=grid,
            in_specs=[
                pl.BlockSpec((tile_m, D_in), lambda i: (i, 0)),  # x tile (bf16)
                pl.BlockSpec((D_in, H), lambda i: (0, 0)),       # W1 resident
                pl.BlockSpec((1, H), lambda i: (0, 0)),          # b1
                pl.BlockSpec((H, H), lambda i: (0, 0)),          # W2 resident
                pl.BlockSpec((1, H), lambda i: (0, 0)),          # b2
                pl.BlockSpec((1, H), lambda i: (0, 0)),          # W3 row
                pl.BlockSpec((1, 1), lambda i: (0, 0)),          # b3
            ],
            out_specs=pl.BlockSpec((tile_m, D_out), lambda i: (i, 0)),
        ),
        compiler_params=pltpu.CompilerParams(
            dimension_semantics=("parallel",),
        ),
    )(x_bf, w1_bf, b1r, w2_bf, b2r, w3r, b3r)


def reference_forward(x, w1, b1, w2, b2, w3, b3):
    # Mirrors the kernel's precision choices: bf16 matmul inputs, f32
    # accumulation, f32 bias/ReLU.
    xb = x.astype(jnp.bfloat16)
    w1b = w1.astype(jnp.bfloat16)
    w2b = w2.astype(jnp.bfloat16)
    h1 = jnp.maximum(
        jnp.dot(xb, w1b, preferred_element_type=jnp.float32) + b1, 0.0)
    h2 = jnp.maximum(
        jnp.dot(h1.astype(jnp.bfloat16), w2b,
                preferred_element_type=jnp.float32) + b2, 0.0)
    return jnp.dot(h2, w3.astype(jnp.float32),
                   preferred_element_type=jnp.float32) + b3


if __name__ == "__main__":
    # Small shapes consistent with the module's forward: x is [batch, input_size].
    batch, input_size, hidden_size, output_size = 16, 256, 256, 1

    key = jax.random.PRNGKey(0)
    kx, k1, k2, k3, kb1, kb2, kb3 = jax.random.split(key, 7)

    x = jax.random.normal(kx, (batch, input_size), dtype=jnp.float32)

    # Deterministic parameter init (uniform, like PyTorch Linear default scale).
    def init_linear(kw, kb, fan_in, fan_out):
        bound = 1.0 / (fan_in ** 0.5)
        w = jax.random.uniform(kw, (fan_in, fan_out), jnp.float32, -bound, bound)
        b = jax.random.uniform(kb, (fan_out,), jnp.float32, -bound, bound)
        return w, b

    w1, b1 = init_linear(k1, kb1, input_size, hidden_size)
    w2, b2 = init_linear(k2, kb2, hidden_size, hidden_size)
    w3, b3 = init_linear(k3, kb3, hidden_size, output_size)

    out = mlp_forward(x, w1, b1, w2, b2, w3, b3)
    out = jax.block_until_ready(out)

    ref = reference_forward(x, w1, b1, w2, b2, w3, b3)
    assert out.shape == (batch, output_size)
    assert jnp.allclose(out, ref, atol=2e-3, rtol=2e-3), (
        float(jnp.max(jnp.abs(out - ref))))

    print("KERNEL_OK")
</pallas_src>

<mosaic_0001>
module attributes {stable_mosaic.version = 11 : i64} {
  func.func @mlp_kernel(%arg0: i32, %arg1: memref<16x256xbf16, #tpu.memory_space<vmem>>, %arg2: memref<256x256xbf16, #tpu.memory_space<vmem>>, %arg3: memref<1x256xf32, #tpu.memory_space<vmem>>, %arg4: memref<256x256xbf16, #tpu.memory_space<vmem>>, %arg5: memref<1x256xf32, #tpu.memory_space<vmem>>, %arg6: memref<1x256xf32, #tpu.memory_space<vmem>>, %arg7: memref<1x1xf32, #tpu.memory_space<vmem>>, %arg8: memref<16x1xf32, #tpu.memory_space<vmem>>) attributes {dimension_semantics = [#tpu.dimension_semantics<parallel>], iteration_bounds = array<i64: 1>, scalar_prefetch = 0 : i64, scratch_operands = 0 : i64, tpu.core_type = #tpu.core_type<tc>, window_params = [{transform_indices = @transform_0, window_bounds = array<i64: 16, 256>}, {pipeline_mode = #tpu.pipeline_mode<synchronous>, transform_indices = @transform_1, window_bounds = array<i64: 256, 256>}, {pipeline_mode = #tpu.pipeline_mode<synchronous>, transform_indices = @transform_2, window_bounds = array<i64: 1, 256>}, {pipeline_mode = #tpu.pipeline_mode<synchronous>, transform_indices = @transform_3, window_bounds = array<i64: 256, 256>}, {pipeline_mode = #tpu.pipeline_mode<synchronous>, transform_indices = @transform_4, window_bounds = array<i64: 1, 256>}, {pipeline_mode = #tpu.pipeline_mode<synchronous>, transform_indices = @transform_5, window_bounds = array<i64: 1, 256>}, {pipeline_mode = #tpu.pipeline_mode<synchronous>, transform_indices = @transform_6, window_bounds = array<i64: 1, 1>}, {transform_indices = @transform_7, window_bounds = array<i64: 16, 1>}]} {
    %c0 = arith.constant 0 : index
    %c0_0 = arith.constant 0 : index
    %0 = vector.load %arg1[%c0, %c0_0] : memref<16x256xbf16, #tpu.memory_space<vmem>>, vector<16x256xbf16>
    %c0_1 = arith.constant 0 : index
    %c0_2 = arith.constant 0 : index
    %1 = vector.load %arg2[%c0_1, %c0_2] : memref<256x256xbf16, #tpu.memory_space<vmem>>, vector<256x256xbf16>
    %cst = arith.constant dense<0.000000e+00> : vector<16x256xf32>
    %2 = tpu.matmul %0, %1, %cst {dimension_numbers = #tpu.dot_dimension_numbers<[1], [0], [0], [1], [0, 0, 1, 1], [], []>} : vector<16x256xbf16>, vector<256x256xbf16>, vector<16x256xf32> -> vector<16x256xf32>
    %c0_3 = arith.constant 0 : index
    %c0_4 = arith.constant 0 : index
    %3 = vector.load %arg3[%c0_3, %c0_4] : memref<1x256xf32, #tpu.memory_space<vmem>>, vector<1x256xf32>
    %4 = vector.broadcast %3 : vector<1x256xf32> to vector<16x256xf32>
    %5 = arith.addf %2, %4 : vector<16x256xf32>
    %cst_5 = arith.constant 0.000000e+00 : f32
    %6 = vector.broadcast %cst_5 : f32 to vector<16x256xf32>
    %7 = arith.maximumf %5, %6 : vector<16x256xf32>
    %8 = arith.truncf %7 : vector<16x256xf32> to vector<16x256xbf16>
    %c0_6 = arith.constant 0 : index
    %c0_7 = arith.constant 0 : index
    %9 = vector.load %arg4[%c0_6, %c0_7] : memref<256x256xbf16, #tpu.memory_space<vmem>>, vector<256x256xbf16>
    %cst_8 = arith.constant dense<0.000000e+00> : vector<16x256xf32>
    %10 = tpu.matmul %8, %9, %cst_8 {dimension_numbers = #tpu.dot_dimension_numbers<[1], [0], [0], [1], [0, 0, 1, 1], [], []>} : vector<16x256xbf16>, vector<256x256xbf16>, vector<16x256xf32> -> vector<16x256xf32>
    %c0_9 = arith.constant 0 : index
    %c0_10 = arith.constant 0 : index
    %11 = vector.load %arg5[%c0_9, %c0_10] : memref<1x256xf32, #tpu.memory_space<vmem>>, vector<1x256xf32>
    %12 = vector.broadcast %11 : vector<1x256xf32> to vector<16x256xf32>
    %13 = arith.addf %10, %12 : vector<16x256xf32>
    %cst_11 = arith.constant 0.000000e+00 : f32
    %14 = vector.broadcast %cst_11 : f32 to vector<16x256xf32>
    %15 = arith.maximumf %13, %14 : vector<16x256xf32>
    %c0_12 = arith.constant 0 : index
    %c0_13 = arith.constant 0 : index
    %16 = vector.load %arg6[%c0_12, %c0_13] : memref<1x256xf32, #tpu.memory_space<vmem>>, vector<1x256xf32>
    %17 = vector.broadcast %16 : vector<1x256xf32> to vector<16x256xf32>
    %18 = arith.mulf %15, %17 : vector<16x256xf32>
    %cst_14 = arith.constant dense<0.000000e+00> : vector<16xf32>
    %19 = vector.multi_reduction <add>, %18, %cst_14 [1] : vector<16x256xf32> to vector<16xf32>
    %20 = vector.shape_cast %19 : vector<16xf32> to vector<16x1xf32>
    %c0_15 = arith.constant 0 : index
    %c0_16 = arith.constant 0 : index
    %21 = vector.load %arg7[%c0_15, %c0_16] : memref<1x1xf32, #tpu.memory_space<vmem>>, vector<1x1xf32>
    %22 = vector.broadcast %21 : vector<1x1xf32> to vector<16x1xf32>
    %23 = arith.addf %20, %22 : vector<16x1xf32>
    %c0_17 = arith.constant 0 : index
    %c0_18 = arith.constant 0 : index
    %24 = vector.load %arg8[%c0_17, %c0_18] : memref<16x1xf32, #tpu.memory_space<vmem>>, vector<16x1xf32>
    tpu.vector_store %arg8[%c0_17, %c0_18], %23 {strides = array<i32>} : memref<16x1xf32, #tpu.memory_space<vmem>>, vector<16x1xf32>,
    return
  }
  func.func @transform_0(%arg0: i32) -> (i32, i32) {
    %c0_i32 = arith.constant 0 : i32
    %c0_i32_0 = arith.constant 0 : i32
    return %arg0, %c0_i32 : i32, i32
  }
  func.func @transform_1(%arg0: i32) -> (i32, i32) {
    %c0_i32 = arith.constant 0 : i32
    %c0_i32_0 = arith.constant 0 : i32
    %c0_i32_1 = arith.constant 0 : i32
    return %c0_i32, %c0_i32_0 : i32, i32
  }
  func.func @transform_2(%arg0: i32) -> (i32, i32) {
    %c0_i32 = arith.constant 0 : i32
    %c0_i32_0 = arith.constant 0 : i32
    %c0_i32_1 = arith.constant 0 : i32
    return %c0_i32, %c0_i32_0 : i32, i32
  }
  func.func @transform_3(%arg0: i32) -> (i32, i32) {
    %c0_i32 = arith.constant 0 : i32
    %c0_i32_0 = arith.constant 0 : i32
    %c0_i32_1 = arith.constant 0 : i32
    return %c0_i32, %c0_i32_0 : i32, i32
  }
  func.func @transform_4(%arg0: i32) -> (i32, i32) {
    %c0_i32 = arith.constant 0 : i32
    %c0_i32_0 = arith.constant 0 : i32
    %c0_i32_1 = arith.constant 0 : i32
    return %c0_i32, %c0_i32_0 : i32, i32
  }
  func.func @transform_5(%arg0: i32) -> (i32, i32) {
    %c0_i32 = arith.constant 0 : i32
    %c0_i32_0 = arith.constant 0 : i32
    %c0_i32_1 = arith.constant 0 : i32
    return %c0_i32, %c0_i32_0 : i32, i32
  }
  func.func @transform_6(%arg0: i32) -> (i32, i32) {
    %c0_i32 = arith.constant 0 : i32
    %c0_i32_0 = arith.constant 0 : i32
    %c0_i32_1 = arith.constant 0 : i32
    return %c0_i32, %c0_i32_0 : i32, i32
  }
  func.func @transform_7(%arg0: i32) -> (i32, i32) {
    %c0_i32 = arith.constant 0 : i32
    %c0_i32_0 = arith.constant 0 : i32
    return %arg0, %c0_i32 : i32, i32
  }
}

</mosaic_0001>

<llo_original>
// kernel: tpu_custom_call.1
$region0: #{tpu_custom_call.1}
  #allocation0 [shape = 'u32[]', space=smem, size = 0x4, offset = 0x4, fixed_abs, tag = 'smem constant byte address 0x4 - core index']
  #allocation1 [shape = 'u32[72,128]{1,0:T(1,128)}', space=vmem, size = 0x9000, scoped, tag = 'internal scratch']
  #allocation2 [shape = 'f32[1,1]{1,0:T(1,128)S(1)}', space=vmem, size = 0x200, scoped, tag = 'scoped memory for tpu_custom_call.1']
  %s0 = inlined_call_operand.hbm [shape: bf16[16,256], index: 0, kind: input, shape index: {}]
  %s1 = inlined_call_operand.hbm [shape: bf16[256,256], index: 1, kind: input, shape index: {}]
  %s2 = inlined_call_operand.vmem [shape: f32[1,256], index: 2, kind: input, shape index: {}]
  %s3 = inlined_call_operand.hbm [shape: bf16[256,256], index: 3, kind: input, shape index: {}]
  %s4 = inlined_call_operand.vmem [shape: f32[1,256], index: 4, kind: input, shape index: {}]
  %s5 = inlined_call_operand.vmem [shape: f32[1,256], index: 5, kind: input, shape index: {}]
  %s6 = inlined_call_operand.<no memory space> [shape: f32[1,1], index: 6, kind: input, shape index: {}]
  %s7 = inlined_call_operand.vmem [shape: f32[16,1], index: 7, kind: output, shape index: {}]
  %s8 = sld [smem:[#allocation0]]
  $region50: #{tpu_custom_call.1} parent=0
    _
  %s10 = ssub.s32 1, %s8
  %s11 = scalar_select 0, %s10, %s8
  %v12 = vstv %s6
  %13 = vst [vmem:[#allocation2] sm:$0x1] %v12
  $region1: #{tpu_custom_call.1} parent=0
    #allocation3 [shape = 'u8[8192]{0}', space=vmem, size = 0x2000, scoped, tag = 'input window, operand 0, single buffered']
    #allocation4 [shape = 's32[1]{0}', space=sflag, size = 0x4, scoped, tag = 'scoped memory for tpu_custom_call.1']
    #allocation5 [shape = 'u8[131072]{0}', space=vmem, size = 0x20000, scoped, tag = 'input window, operand 1, single buffered']
    #allocation6 [shape = 's32[1]{0}', space=sflag, size = 0x4, scoped, tag = 'scoped memory for tpu_custom_call.1']
    #allocation7 [shape = 'u8[131072]{0}', space=vmem, size = 0x20000, scoped, tag = 'input window, operand 3, single buffered']
    %14 = vsyncpa [#allocation4], 0
    %15 = vsyncpa [#allocation6], 0
    // Predicated region
    $region2: #{tpu_custom_call.1} parent=1 // pred_check
      _
    $region3: #{tpu_custom_call.1} parent=1 // pred_check_branch
      %17 = sbr.rel (0) target = $region5
    $region4: #{tpu_custom_call.1} parent=1 // pred_region
      %19 = vsyncadd [#allocation4], 0
      %s20 = sshll.u32 %s0, 4
      %s21 = int_to_ptr.hbm [resolvable:$true] %s20
      %s22 = sshll.u32 [#allocation3], 4
      %s23 = int_to_ptr.vmem [resolvable:$true] %s22
      %28 = dma.hbm_to_vmem [thread:$0]  %s21, 256, %s23, [#allocation4], 128, 128, 8
    $region5: #{tpu_custom_call.1} parent=1 // pred_fallthru
      _
    // Predicated region
    $region6: #{tpu_custom_call.1} parent=1 // pred_check
      _
    $region7: #{tpu_custom_call.1} parent=1 // pred_check_branch
      %30 = sbr.rel (0) target = $region9
    $region8: #{tpu_custom_call.1} parent=1 // pred_region
      %32 = vsyncadd [#allocation6], 0
      %s33 = sshll.u32 %s1, 4
      %s34 = int_to_ptr.hbm [resolvable:$true] %s33
      %s35 = sshll.u32 [#allocation5], 4
      %s36 = int_to_ptr.vmem [resolvable:$true] %s35
      %41 = dma.hbm_to_vmem [thread:$0]  %s34, 4096, %s36, [#allocation6], 128, 128, 8
    $region9: #{tpu_custom_call.1} parent=1 // pred_fallthru
      _
    // Predicated region
    $region10: #{tpu_custom_call.1} parent=1 // pred_check
      _
    $region11: #{tpu_custom_call.1} parent=1 // pred_check_branch
      %43 = sbr.rel (0) target = $region13
    $region12: #{tpu_custom_call.1} parent=1 // pred_region
      _
    $region13: #{tpu_custom_call.1} parent=1 // pred_fallthru
      _
    // Predicated region
    $region14: #{tpu_custom_call.1} parent=1 // pred_check
      _
    $region15: #{tpu_custom_call.1} parent=1 // pred_check_branch
      %45 = sbr.rel (0) target = $region17
    $region16: #{tpu_custom_call.1} parent=1 // pred_region
      %47 = vsyncadd [#allocation6], 0
      %s48 = sshll.u32 %s3, 4
      %s49 = int_to_ptr.hbm [resolvable:$true] %s48
      %s50 = sshll.u32 [#allocation7], 4
      %s51 = int_to_ptr.vmem [resolvable:$true] %s50
      %56 = dma.hbm_to_vmem [thread:$0]  %s49, 4096, %s51, [#allocation6], 128, 128, 8
    $region17: #{tpu_custom_call.1} parent=1 // pred_fallthru
      _
    // Predicated region
    $region18: #{tpu_custom_call.1} parent=1 // pred_check
      _
    $region19: #{tpu_custom_call.1} parent=1 // pred_check_branch
      %58 = sbr.rel (0) target = $region21
    $region20: #{tpu_custom_call.1} parent=1 // pred_region
      _
    $region21: #{tpu_custom_call.1} parent=1 // pred_fallthru
      _
    // Predicated region
    $region22: #{tpu_custom_call.1} parent=1 // pred_check
      _
    $region23: #{tpu_custom_call.1} parent=1 // pred_check_branch
      %60 = sbr.rel (0) target = $region25
    $region24: #{tpu_custom_call.1} parent=1 // pred_region
      _
    $region25: #{tpu_custom_call.1} parent=1 // pred_fallthru
      _
    // Predicated region
    $region26: #{tpu_custom_call.1} parent=1 // pred_check
      _
    $region27: #{tpu_custom_call.1} parent=1 // pred_check_branch
      %62 = sbr.rel (0) target = $region29
    $region28: #{tpu_custom_call.1} parent=1 // pred_region
      _
    $region29: #{tpu_custom_call.1} parent=1 // pred_fallthru
      _
    // Predicated region
    $region30: #{tpu_custom_call.1} parent=1 // pred_check
      _
    $region31: #{tpu_custom_call.1} parent=1 // pred_check_branch
      %64 = sbr.rel (0) target = $region33
    $region32: #{tpu_custom_call.1} parent=1 // pred_region
      %66 = dma.done [#allocation4], 256
    $region33: #{tpu_custom_call.1} parent=1 // pred_fallthru
      _
    // Predicated region
    $region34: #{tpu_custom_call.1} parent=1 // pred_check
      _
    $region35: #{tpu_custom_call.1} parent=1 // pred_check_branch
      %68 = sbr.rel (0) target = $region37
    $region36: #{tpu_custom_call.1} parent=1 // pred_region
      %70 = dma.done [#allocation6], 4096
    $region37: #{tpu_custom_call.1} parent=1 // pred_fallthru
      _
    // Predicated region
    $region38: #{tpu_custom_call.1} parent=1 // pred_check
      _
    $region39: #{tpu_custom_call.1} parent=1 // pred_check_branch
      %72 = sbr.rel (0) target = $region41
    $region40: #{tpu_custom_call.1} parent=1 // pred_region
      %74 = dma.done [#allocation6], 4096
    $region41: #{tpu_custom_call.1} parent=1 // pred_fallthru
      _
    %v75 = vld [vmem:[#allocation3] sm:$0xff]
    %v76 = vld [vmem:[#allocation3 + $0x8] sm:$0xff]
    %v77 = vld [vmem:[#allocation5] sm:$0xff]
    %v78 = vld [vmem:[#allocation5 + $0x8] sm:$0xff]
    %v79 = vld [vmem:[#allocation5 + $0x10] sm:$0xff]
    %v80 = vld [vmem:[#allocation5 + $0x18] sm:$0xff]
    %v81 = vld [vmem:[#allocation5 + $0x20] sm:$0xff]
    %v82 = vld [vmem:[#allocation5 + $0x28] sm:$0xff]
    %v83 = vld [vmem:[#allocation5 + $0x30] sm:$0xff]
    %v84 = vld [vmem:[#allocation5 + $0x38] sm:$0xff]
    %v85 = vld [vmem:[#allocation5 + $0x40] sm:$0xff]
    %v86 = vld [vmem:[#allocation5 + $0x48] sm:$0xff]
    %v87 = vld [vmem:[#allocation5 + $0x50] sm:$0xff]
    %v88 = vld [vmem:[#allocation5 + $0x58] sm:$0xff]
    %v89 = vld [vmem:[#allocation5 + $0x60] sm:$0xff]
    %v90 = vld [vmem:[#allocation5 + $0x68] sm:$0xff]
    %v91 = vld [vmem:[#allocation5 + $0x70] sm:$0xff]
    %v92 = vld [vmem:[#allocation5 + $0x78] sm:$0xff]
    %v93 = vld [vmem:[#allocation5 + $0x80] sm:$0xff]
    %v94 = vld [vmem:[#allocation5 + $0x88] sm:$0xff]
    %v95 = vld [vmem:[#allocation5 + $0x90] sm:$0xff]
    %v96 = vld [vmem:[#allocation5 + $0x98] sm:$0xff]
    %v97 = vld [vmem:[#allocation5 + $0xa0] sm:$0xff]
    %v98 = vld [vmem:[#allocation5 + $0xa8] sm:$0xff]
    %v99 = vld [vmem:[#allocation5 + $0xb0] sm:$0xff]
    %v100 = vld [vmem:[#allocation5 + $0xb8] sm:$0xff]
    %v101 = vld [vmem:[#allocation5 + $0xc0] sm:$0xff]
    %v102 = vld [vmem:[#allocation5 + $0xc8] sm:$0xff]
    %v103 = vld [vmem:[#allocation5 + $0xd0] sm:$0xff]
    %v104 = vld [vmem:[#allocation5 + $0xd8] sm:$0xff]
    %v105 = vld [vmem:[#allocation5 + $0xe0] sm:$0xff]
    %v106 = vld [vmem:[#allocation5 + $0xe8] sm:$0xff]
    %v107 = vld [vmem:[#allocation5 + $0xf0] sm:$0xff]
    %v108 = vld [vmem:[#allocation5 + $0xf8] sm:$0xff]
    %v109 = vld [vmem:[%s2] sm:$0x3]
    %v111 = vperm.slane %v109, 0
    %v112 = vperm.slane %v109, 1
    %v117 = vunpack.c.l.b16 %v75
    %v118 = vunpack.c.h.b16 %v75
    %v119 = vunpack.c.l.b16 %v76
    %v120 = vunpack.c.h.b16 %v76
    %v121 = vpack.c.b16 %v119, %v117
    %v122 = vpack.c.b16 %v120, %v118
    %v157 = vunpack.c.l.b16 %v77
    %v158 = vunpack.c.h.b16 %v77
    %v159 = vunpack.c.l.b16 %v78
    %v160 = vunpack.c.h.b16 %v78
    %v161 = vunpack.c.l.b16 %v79
    %v162 = vunpack.c.h.b16 %v79
    %v163 = vunpack.c.l.b16 %v80
    %v164 = vunpack.c.h.b16 %v80
    %v165 = vunpack.c.l.b16 %v81
    %v166 = vunpack.c.h.b16 %v81
    %v167 = vunpack.c.l.b16 %v82
    %v168 = vunpack.c.h.b16 %v82
    %v169 = vunpack.c.l.b16 %v83
    %v170 = vunpack.c.h.b16 %v83
    %v171 = vunpack.c.l.b16 %v84
    %v172 = vunpack.c.h.b16 %v84
    %v173 = vunpack.c.l.b16 %v85
    %v174 = vunpack.c.h.b16 %v85
    %v175 = vunpack.c.l.b16 %v86
    %v176 = vunpack.c.h.b16 %v86
    %v177 = vunpack.c.l.b16 %v87
    %v178 = vunpack.c.h.b16 %v87
    %v179 = vunpack.c.l.b16 %v88
    %v180 = vunpack.c.h.b16 %v88
    %v181 = vunpack.c.l.b16 %v89
    %v182 = vunpack.c.h.b16 %v89
    %v183 = vunpack.c.l.b16 %v90
    %v184 = vunpack.c.h.b16 %v90
    %v185 = vunpack.c.l.b16 %v91
    %v186 = vunpack.c.h.b16 %v91
    %v187 = vunpack.c.l.b16 %v92
    %v188 = vunpack.c.h.b16 %v92
    %v189 = vunpack.c.l.b16 %v93
    %v190 = vunpack.c.h.b16 %v93
    %v191 = vunpack.c.l.b16 %v94
    %v192 = vunpack.c.h.b16 %v94
    %v193 = vunpack.c.l.b16 %v95
    %v194 = vunpack.c.h.b16 %v95
    %v195 = vunpack.c.l.b16 %v96
    %v196 = vunpack.c.h.b16 %v96
    %v197 = vunpack.c.l.b16 %v97
    %v198 = vunpack.c.h.b16 %v97
    %v199 = vunpack.c.l.b16 %v98
    %v200 = vunpack.c.h.b16 %v98
    %v201 = vunpack.c.l.b16 %v99
    %v202 = vunpack.c.h.b16 %v99
    %v203 = vunpack.c.l.b16 %v100
    %v204 = vunpack.c.h.b16 %v100
    %v205 = vunpack.c.l.b16 %v101
    %v206 = vunpack.c.h.b16 %v101
    %v207 = vunpack.c.l.b16 %v102
    %v208 = vunpack.c.h.b16 %v102
    %v209 = vunpack.c.l.b16 %v103
    %v210 = vunpack.c.h.b16 %v103
    %v211 = vunpack.c.l.b16 %v104
    %v212 = vunpack.c.h.b16 %v104
    %v213 = vunpack.c.l.b16 %v105
    %v214 = vunpack.c.h.b16 %v105
    %v215 = vunpack.c.l.b16 %v106
    %v216 = vunpack.c.h.b16 %v106
    %v217 = vunpack.c.l.b16 %v107
    %v218 = vunpack.c.h.b16 %v107
    %v219 = vunpack.c.l.b16 %v108
    %v220 = vunpack.c.h.b16 %v108
    %v221 = vpack.c.b16 %v159, %v157
    %v222 = vpack.c.b16 %v160, %v158
    %v223 = vpack.c.b16 %v163, %v161
    %v224 = vpack.c.b16 %v164, %v162
    %v225 = vpack.c.b16 %v167, %v165
    %v226 = vpack.c.b16 %v168, %v166
    %v227 = vpack.c.b16 %v171, %v169
    %v228 = vpack.c.b16 %v172, %v170
    %v229 = vpack.c.b16 %v175, %v173
    %v230 = vpack.c.b16 %v176, %v174
    %v231 = vpack.c.b16 %v179, %v177
    %v232 = vpack.c.b16 %v180, %v178
    %v233 = vpack.c.b16 %v183, %v181
    %v234 = vpack.c.b16 %v184, %v182
    %v235 = vpack.c.b16 %v187, %v185
    %v236 = vpack.c.b16 %v188, %v186
    %v237 = vpack.c.b16 %v191, %v189
    %v238 = vpack.c.b16 %v192, %v190
    %v239 = vpack.c.b16 %v195, %v193
    %v240 = vpack.c.b16 %v196, %v194
    %v241 = vpack.c.b16 %v199, %v197
    %v242 = vpack.c.b16 %v200, %v198
    %v243 = vpack.c.b16 %v203, %v201
    %v244 = vpack.c.b16 %v204, %v202
    %v245 = vpack.c.b16 %v207, %v205
    %v246 = vpack.c.b16 %v208, %v206
    %v247 = vpack.c.b16 %v211, %v209
    %v248 = vpack.c.b16 %v212, %v210
    %v249 = vpack.c.b16 %v215, %v213
    %v250 = vpack.c.b16 %v216, %v214
    %v251 = vpack.c.b16 %v219, %v217
    %v252 = vpack.c.b16 %v220, %v218
    %285 = vmatpush.bf16.msra.mxu0 %v235
    %286 = vmatpush.bf16.msra.mxu0 %v233
    %287 = vmatpush.bf16.msra.mxu0 %v231
    %288 = vmatpush.bf16.msra.mxu0 %v229
    %289 = vmatpush.bf16.msra.mxu0 %v227
    %290 = vmatpush.bf16.msra.mxu0 %v225
    %291 = vmatpush.bf16.msra.mxu0 %v223
    %292 = vmatpush.bf16.msra.mxu0 %v221
    %293 = vmatmul.bf16.gmra.mxu0 %v121
    %v294 = vpop.f32.mrf.mxu0
    %v295 = vadd.f32 %v111, %v294
    %v296 = vpop.f32.mrf.mxu0
    %v297 = vadd.f32 %v111, %v296
    %298 = vdwg.mxu0
    %299 = vmatpush.bf16.msra.mxu0 %v251
    %300 = vmatpush.bf16.msra.mxu0 %v249
    %301 = vmatpush.bf16.msra.mxu0 %v247
    %302 = vmatpush.bf16.msra.mxu0 %v245
    %303 = vmatpush.bf16.msra.mxu0 %v243
    %304 = vmatpush.bf16.msra.mxu0 %v241
    %305 = vmatpush.bf16.msra.mxu0 %v239
    %306 = vmatpush.bf16.msra.mxu0 %v237
    %307 = vmatmul.bf16.gmra.mxu0 %v122
    %v308 = vpop.f32.mrf.mxu0
    %v309 = vadd.f32 %v295, %v308
    %v310 = vpop.f32.mrf.mxu0
    %v311 = vadd.f32 %v297, %v310
    %312 = vdwg.mxu0
    %313 = vmatpush.bf16.msra.mxu0 %v236
    %314 = vmatpush.bf16.msra.mxu0 %v234
    %315 = vmatpush.bf16.msra.mxu0 %v232
    %316 = vmatpush.bf16.msra.mxu0 %v230
    %317 = vmatpush.bf16.msra.mxu0 %v228
    %318 = vmatpush.bf16.msra.mxu0 %v226
    %319 = vmatpush.bf16.msra.mxu0 %v224
    %320 = vmatpush.bf16.msra.mxu0 %v222
    %321 = vmatmul.bf16.gmra.mxu0 %v121
    %v322 = vpop.f32.mrf.mxu0
    %v323 = vadd.f32 %v112, %v322
    %v324 = vpop.f32.mrf.mxu0
    %v325 = vadd.f32 %v112, %v324
    %326 = vdwg.mxu0
    %327 = vmatpush.bf16.msra.mxu0 %v252
    %328 = vmatpush.bf16.msra.mxu0 %v250
    %329 = vmatpush.bf16.msra.mxu0 %v248
    %330 = vmatpush.bf16.msra.mxu0 %v246
    %331 = vmatpush.bf16.msra.mxu0 %v244
    %332 = vmatpush.bf16.msra.mxu0 %v242
    %333 = vmatpush.bf16.msra.mxu0 %v240
    %334 = vmatpush.bf16.msra.mxu0 %v238
    %335 = vmatmul.bf16.gmra.mxu0 %v122
    %v336 = vpop.f32.mrf.mxu0
    %v337 = vadd.f32 %v323, %v336
    %v338 = vpop.f32.mrf.mxu0
    %v339 = vadd.f32 %v325, %v338
    %340 = vdwg.mxu0
    %v341 = vmax.f32 %v309, 0.0
    %v342 = vmax.f32 %v337, 0.0
    %v343 = vmax.f32 %v311, 0.0
    %v344 = vmax.f32 %v339, 0.0
    %v345 = vpack.c.bf16 %v343, %v341
    %v346 = vpack.c.bf16 %v344, %v342
    %v347 = vld [vmem:[#allocation7] sm:$0xff]
    %v348 = vld [vmem:[#allocation7 + $0x8] sm:$0xff]
    %v349 = vld [vmem:[#allocation7 + $0x10] sm:$0xff]
    %v350 = vld [vmem:[#allocation7 + $0x18] sm:$0xff]
    %v351 = vld [vmem:[#allocation7 + $0x20] sm:$0xff]
    %v352 = vld [vmem:[#allocation7 + $0x28] sm:$0xff]
    %v353 = vld [vmem:[#allocation7 + $0x30] sm:$0xff]
    %v354 = vld [vmem:[#allocation7 + $0x38] sm:$0xff]
    %v355 = vld [vmem:[#allocation7 + $0x40] sm:$0xff]
    %v356 = vld [vmem:[#allocation7 + $0x48] sm:$0xff]
    %v357 = vld [vmem:[#allocation7 + $0x50] sm:$0xff]
    %v358 = vld [vmem:[#allocation7 + $0x58] sm:$0xff]
    %v359 = vld [vmem:[#allocation7 + $0x60] sm:$0xff]
    %v360 = vld [vmem:[#allocation7 + $0x68] sm:$0xff]
    %v361 = vld [vmem:[#allocation7 + $0x70] sm:$0xff]
    %v362 = vld [vmem:[#allocation7 + $0x78] sm:$0xff]
    %v363 = vld [vmem:[#allocation7 + $0x80] sm:$0xff]
    %v364 = vld [vmem:[#allocation7 + $0x88] sm:$0xff]
    %v365 = vld [vmem:[#allocation7 + $0x90] sm:$0xff]
    %v366 = vld [vmem:[#allocation7 + $0x98] sm:$0xff]
    %v367 = vld [vmem:[#allocation7 + $0xa0] sm:$0xff]
    %v368 = vld [vmem:[#allocation7 + $0xa8] sm:$0xff]
    %v369 = vld [vmem:[#allocation7 + $0xb0] sm:$0xff]
    %v370 = vld [vmem:[#allocation7 + $0xb8] sm:$0xff]
    %v371 = vld [vmem:[#allocation7 + $0xc0] sm:$0xff]
    %v372 = vld [vmem:[#allocation7 + $0xc8] sm:$0xff]
    %v373 = vld [vmem:[#allocation7 + $0xd0] sm:$0xff]
    %v374 = vld [vmem:[#allocation7 + $0xd8] sm:$0xff]
    %v375 = vld [vmem:[#allocation7 + $0xe0] sm:$0xff]
    %v376 = vld [vmem:[#allocation7 + $0xe8] sm:$0xff]
    %v377 = vld [vmem:[#allocation7 + $0xf0] sm:$0xff]
    %v378 = vld [vmem:[#allocation7 + $0xf8] sm:$0xff]
    %v379 = vld [vmem:[%s4] sm:$0x3]
    %v381 = vperm.slane %v379, 0
    %v382 = vperm.slane %v379, 1
    %v417 = vunpack.c.l.b16 %v347
    %v418 = vunpack.c.h.b16 %v347
    %v419 = vunpack.c.l.b16 %v348
    %v420 = vunpack.c.h.b16 %v348
    %v421 = vunpack.c.l.b16 %v349
    %v422 = vunpack.c.h.b16 %v349
    %v423 = vunpack.c.l.b16 %v350
    %v424 = vunpack.c.h.b16 %v350
    %v425 = vunpack.c.l.b16 %v351
    %v426 = vunpack.c.h.b16 %v351
    %v427 = vunpack.c.l.b16 %v352
    %v428 = vunpack.c.h.b16 %v352
    %v429 = vunpack.c.l.b16 %v353
    %v430 = vunpack.c.h.b16 %v353
    %v431 = vunpack.c.l.b16 %v354
    %v432 = vunpack.c.h.b16 %v354
    %v433 = vunpack.c.l.b16 %v355
    %v434 = vunpack.c.h.b16 %v355
    %v435 = vunpack.c.l.b16 %v356
    %v436 = vunpack.c.h.b16 %v356
    %v437 = vunpack.c.l.b16 %v357
    %v438 = vunpack.c.h.b16 %v357
    %v439 = vunpack.c.l.b16 %v358
    %v440 = vunpack.c.h.b16 %v358
    %v441 = vunpack.c.l.b16 %v359
    %v442 = vunpack.c.h.b16 %v359
    %v443 = vunpack.c.l.b16 %v360
    %v444 = vunpack.c.h.b16 %v360
    %v445 = vunpack.c.l.b16 %v361
    %v446 = vunpack.c.h.b16 %v361
    %v447 = vunpack.c.l.b16 %v362
    %v448 = vunpack.c.h.b16 %v362
    %v449 = vunpack.c.l.b16 %v363
    %v450 = vunpack.c.h.b16 %v363
    %v451 = vunpack.c.l.b16 %v364
    %v452 = vunpack.c.h.b16 %v364
    %v453 = vunpack.c.l.b16 %v365
    %v454 = vunpack.c.h.b16 %v365
    %v455 = vunpack.c.l.b16 %v366
    %v456 = vunpack.c.h.b16 %v366
    %v457 = vunpack.c.l.b16 %v367
    %v458 = vunpack.c.h.b16 %v367
    %v459 = vunpack.c.l.b16 %v368
    %v460 = vunpack.c.h.b16 %v368
    %v461 = vunpack.c.l.b16 %v369
    %v462 = vunpack.c.h.b16 %v369
    %v463 = vunpack.c.l.b16 %v370
    %v464 = vunpack.c.h.b16 %v370
    %v465 = vunpack.c.l.b16 %v371
    %v466 = vunpack.c.h.b16 %v371
    %v467 = vunpack.c.l.b16 %v372
    %v468 = vunpack.c.h.b16 %v372
    %v469 = vunpack.c.l.b16 %v373
    %v470 = vunpack.c.h.b16 %v373
    %v471 = vunpack.c.l.b16 %v374
    %v472 = vunpack.c.h.b16 %v374
    %v473 = vunpack.c.l.b16 %v375
    %v474 = vunpack.c.h.b16 %v375
    %v475 = vunpack.c.l.b16 %v376
    %v476 = vunpack.c.h.b16 %v376
    %v477 = vunpack.c.l.b16 %v377
    %v478 = vunpack.c.h.b16 %v377
    %v479 = vunpack.c.l.b16 %v378
    %v480 = vunpack.c.h.b16 %v378
    %v481 = vpack.c.b16 %v419, %v417
    %v482 = vpack.c.b16 %v420, %v418
    %v483 = vpack.c.b16 %v423, %v421
    %v484 = vpack.c.b16 %v424, %v422
    %v485 = vpack.c.b16 %v427, %v425
    %v486 = vpack.c.b16 %v428, %v426
    %v487 = vpack.c.b16 %v431, %v429
    %v488 = vpack.c.b16 %v432, %v430
    %v489 = vpack.c.b16 %v435, %v433
    %v490 = vpack.c.b16 %v436, %v434
    %v491 = vpack.c.b16 %v439, %v437
    %v492 = vpack.c.b16 %v440, %v438
    %v493 = vpack.c.b16 %v443, %v441
    %v494 = vpack.c.b16 %v444, %v442
    %v495 = vpack.c.b16 %v447, %v445
    %v496 = vpack.c.b16 %v448, %v446
    %v497 = vpack.c.b16 %v451, %v449
    %v498 = vpack.c.b16 %v452, %v450
    %v499 = vpack.c.b16 %v455, %v453
    %v500 = vpack.c.b16 %v456, %v454
    %v501 = vpack.c.b16 %v459, %v457
    %v502 = vpack.c.b16 %v460, %v458
    %v503 = vpack.c.b16 %v463, %v461
    %v504 = vpack.c.b16 %v464, %v462
    %v505 = vpack.c.b16 %v467, %v465
    %v506 = vpack.c.b16 %v468, %v466
    %v507 = vpack.c.b16 %v471, %v469
    %v508 = vpack.c.b16 %v472, %v470
    %v509 = vpack.c.b16 %v475, %v473
    %v510 = vpack.c.b16 %v476, %v474
    %v511 = vpack.c.b16 %v479, %v477
    %v512 = vpack.c.b16 %v480, %v478
    %545 = vmatpush.bf16.msra.mxu0 %v495
    %546 = vmatpush.bf16.msra.mxu0 %v493
    %547 = vmatpush.bf16.msra.mxu0 %v491
    %548 = vmatpush.bf16.msra.mxu0 %v489
    %549 = vmatpush.bf16.msra.mxu0 %v487
    %550 = vmatpush.bf16.msra.mxu0 %v485
    %551 = vmatpush.bf16.msra.mxu0 %v483
    %552 = vmatpush.bf16.msra.mxu0 %v481
    %553 = vmatmul.bf16.gmra.mxu0 %v345
    %v554 = vpop.f32.mrf.mxu0
    %v555 = vadd.f32 %v381, %v554
    %v556 = vpop.f32.mrf.mxu0
    %v557 = vadd.f32 %v381, %v556
    %558 = vdwg.mxu0
    %559 = vmatpush.bf16.msra.mxu0 %v511
    %560 = vmatpush.bf16.msra.mxu0 %v509
    %561 = vmatpush.bf16.msra.mxu0 %v507
    %562 = vmatpush.bf16.msra.mxu0 %v505
    %563 = vmatpush.bf16.msra.mxu0 %v503
    %564 = vmatpush.bf16.msra.mxu0 %v501
    %565 = vmatpush.bf16.msra.mxu0 %v499
    %566 = vmatpush.bf16.msra.mxu0 %v497
    %567 = vmatmul.bf16.gmra.mxu0 %v346
    %v568 = vpop.f32.mrf.mxu0
    %v569 = vadd.f32 %v555, %v568
    %v570 = vpop.f32.mrf.mxu0
    %v571 = vadd.f32 %v557, %v570
    %572 = vdwg.mxu0
    %573 = vmatpush.bf16.msra.mxu0 %v496
    %574 = vmatpush.bf16.msra.mxu0 %v494
    %575 = vmatpush.bf16.msra.mxu0 %v492
    %576 = vmatpush.bf16.msra.mxu0 %v490
    %577 = vmatpush.bf16.msra.mxu0 %v488
    %578 = vmatpush.bf16.msra.mxu0 %v486
    %579 = vmatpush.bf16.msra.mxu0 %v484
    %580 = vmatpush.bf16.msra.mxu0 %v482
    %581 = vmatmul.bf16.gmra.mxu0 %v345
    %v582 = vpop.f32.mrf.mxu0
    %v583 = vadd.f32 %v382, %v582
    %v584 = vpop.f32.mrf.mxu0
    %v585 = vadd.f32 %v382, %v584
    %586 = vdwg.mxu0
    %587 = vmatpush.bf16.msra.mxu0 %v512
    %588 = vmatpush.bf16.msra.mxu0 %v510
    %589 = vmatpush.bf16.msra.mxu0 %v508
    %590 = vmatpush.bf16.msra.mxu0 %v506
    %591 = vmatpush.bf16.msra.mxu0 %v504
    %592 = vmatpush.bf16.msra.mxu0 %v502
    %593 = vmatpush.bf16.msra.mxu0 %v500
    %594 = vmatpush.bf16.msra.mxu0 %v498
    %595 = vmatmul.bf16.gmra.mxu0 %v346
    %v596 = vpop.f32.mrf.mxu0
    %v597 = vadd.f32 %v583, %v596
    %v598 = vpop.f32.mrf.mxu0
    %v599 = vadd.f32 %v585, %v598
    %600 = vdwg.mxu0
    %v601 = vmax.f32 %v569, 0.0
    %v602 = vmax.f32 %v597, 0.0
    %v603 = vmax.f32 %v571, 0.0
    %v604 = vmax.f32 %v599, 0.0
    %v605 = vld [vmem:[%s5] sm:$0x3]
    %v607 = vperm.slane %v605, 0
    %v608 = vperm.slane %v605, 1
    %v611 = vmul.f32 %v601, %v607
    %v612 = vmul.f32 %v602, %v608
    %v613 = vmul.f32 %v603, %v607
    %v614 = vmul.f32 %v604, %v608
    %v615 = vadd.f32 %v611, %v612
    %616 = vadd.xlane.f32.xlu0 %v615
    %v617 = vpop.xlane.xlu0 %616
    %v618 = vadd.f32 %v613, %v614
    %619 = vadd.xlane.f32.xlu0 %v618
    %v620 = vpop.xlane.xlu0 %619
    %v621 = vld [vmem:[#allocation2] sm:$0x1]
    %v623 = vperm.slane %v621, 0
    %v625 = vadd.f32 %v617, %v623
    %v626 = vadd.f32 %v620, %v623
    %vm627 = vcmask 7168
    %628 = vst.msk [vmem:[%s7] sm:$0xff] %vm627, %v625
    %629 = vst.msk [vmem:[%s7 + $0x8] sm:$0xff] %vm627, %v626
    // Predicated region
    $region42: #{tpu_custom_call.1} parent=1 // pred_check
      _
    $region43: #{tpu_custom_call.1} parent=1 // pred_check_branch
      %631 = sbr.rel (0) target = $region45
    $region44: #{tpu_custom_call.1} parent=1 // pred_region
      _
    $region45: #{tpu_custom_call.1} parent=1 // pred_fallthru
      _
    // Predicated region
    $region46: #{tpu_custom_call.1} parent=1 // pred_check
      _
    $region47: #{tpu_custom_call.1} parent=1 // pred_check_branch
      %633 = sbr.rel (0) target = $region49
    $region48: #{tpu_custom_call.1} parent=1 // pred_region
      _
    $region49: #{tpu_custom_call.1} parent=1 // pred_fallthru
      _
    %634 = vsyncpa [#allocation4], 1
    %635 = vsyncpa [#allocation6], 1

</llo_original>
